<compile_context>
chip_gen: v7x
topology: tpu7x:2x2x1
jax: 0.10.0
libtpu: 0.0.40
codegen_flags: <defaults>
</compile_context>

<pallas_src>
import jax
import jax.numpy as jnp
from jax.experimental import pallas as pl
from jax.experimental.pallas import tpu as pltpu

IN_FEATURES = 784
OUT_FEATURES = 10
N_PAD = 128               # lane-dense padded output width
TM_BF16 = 4096            # default batch tile (rows) for bf16 inputs
TM_F32 = 2048             # default batch tile (rows) for f32 inputs


def _ceil_to(x, m):
    return ((x + m - 1) // m) * m


def linear_kernel(x_ref, w_ref, b_ref, o_ref):
    # x_ref: (TM, 784) bf16/f32, w_ref: (784, 128) bf16/f32,
    # b_ref: (1, 128) f32, o_ref: (TM, 128) f32
    acc = jnp.dot(x_ref[...], w_ref[...], preferred_element_type=jnp.float32)
    o_ref[...] = (acc + b_ref[...]).astype(o_ref.dtype)


def prepare_params(w, b, *, compute_dtype=jnp.bfloat16):
    """Pad nn.Linear params once, outside the per-call forward path.

    w: (10, 784), b: (10,)  ->  w_pad: (784, 128) compute_dtype, b_pad: (1, 128) f32
    """
    w_pad = jnp.pad(w.T.astype(compute_dtype),
                    ((0, 0), (0, N_PAD - OUT_FEATURES)))
    b_pad = jnp.pad(b.astype(jnp.float32),
                    (0, N_PAD - OUT_FEATURES)).reshape(1, N_PAD)
    return w_pad, b_pad


def mnist_logistic_forward(x, w_pad, b_pad, *, tm=None, return_padded=False):
    """x: (B, 784), w_pad: (784, 128), b_pad: (1, 128) -> (B, 10) float32 logits.

    Same math as torch nn.Linear: x @ W.T + b (with W/b pre-padded to 128 lanes).
    Set return_padded=True to get the (B, 128) block for a fused downstream
    consumer (e.g. log-softmax / NLL) and skip the column slice.
    """
    B = x.shape[0]
    compute_dtype = w_pad.dtype
    align = 16 if compute_dtype == jnp.bfloat16 else 8
    if tm is None:
        tm = TM_BF16 if compute_dtype == jnp.bfloat16 else TM_F32

    if x.dtype != compute_dtype:
        # No-op when the data producer already emits the compute dtype.
        x = x.astype(compute_dtype)

    # Batch tile selection:
    #  * tiny batch  -> single full-array tile (always a legal block shape);
    #  * mid batch   -> >=2 balanced, align-rounded tiles (keeps both v7x
    #                   TensorCores busy via the "parallel" grid axis);
    #  * large batch -> big fixed tile to amortize per-step overhead.
    # The last tile may be ragged; Pallas pads the boundary block, and the
    # out-of-bounds rows are never part of the returned (B, ...) output.
    if B <= 2 * align:
        tile_m = B
    elif B <= 2 * tm:
        tile_m = _ceil_to(pl.cdiv(B, 2), align)
    else:
        tile_m = tm
    grid = (pl.cdiv(B, tile_m),)

    # Explicit scoped-VMEM budget: 2x double-buffered x tile + 2x out tile +
    # resident W/b + slack.  Comfortably under every generation's physical VMEM
    # (incl. v7x's 64 MiB) at the default tile sizes.
    itemsize = jnp.dtype(compute_dtype).itemsize
    vmem_bytes = (2 * tile_m * IN_FEATURES * itemsize
                  + 2 * tile_m * N_PAD * 4
                  + 2 * IN_FEATURES * N_PAD * itemsize
                  + 2 * N_PAD * 4
                  + (2 << 20))
    vmem_limit = max(vmem_bytes, 32 * 1024 * 1024)

    out_padded = pl.pallas_call(
        linear_kernel,
        out_shape=jax.ShapeDtypeStruct((B, N_PAD), jnp.float32),
        grid_spec=pltpu.PrefetchScalarGridSpec(
            num_scalar_prefetch=0,
            grid=grid,
            in_specs=[
                # x: one (tile_m, 784) tile per grid step -> pipelined DMA.
                pl.BlockSpec((tile_m, IN_FEATURES), lambda i: (i, 0)),
                # Weight and bias stay resident across all batch tiles.
                pl.BlockSpec((IN_FEATURES, N_PAD), lambda i: (0, 0)),
                pl.BlockSpec((1, N_PAD), lambda i: (0, 0)),
            ],
            out_specs=pl.BlockSpec((tile_m, N_PAD), lambda i: (i, 0)),
        ),
        compiler_params=pltpu.CompilerParams(
            dimension_semantics=("parallel",),
            vmem_limit_bytes=int(vmem_limit)),
    )(x, w_pad, b_pad)

    if return_padded:
        return out_padded
    return out_padded[:, :OUT_FEATURES]


if __name__ == "__main__":
    key = jax.random.PRNGKey(0)
    k_x, k_w, k_b = jax.random.split(key, 3)

    B = 64
    x = jax.random.normal(k_x, (B, IN_FEATURES), dtype=jnp.float32)

    # Deterministic init mimicking nn.Linear default (uniform in +-1/sqrt(784)).
    bound = 1.0 / (IN_FEATURES ** 0.5)
    w = jax.random.uniform(k_w, (OUT_FEATURES, IN_FEATURES),
                           minval=-bound, maxval=bound, dtype=jnp.float32)
    b = jax.random.uniform(k_b, (OUT_FEATURES,),
                           minval=-bound, maxval=bound, dtype=jnp.float32)

    # Pad params once (outside the forward path); cast x at the producer.
    w_pad, b_pad = prepare_params(w, b, compute_dtype=jnp.bfloat16)
    x_bf16 = x.astype(jnp.bfloat16)

    fwd = jax.jit(mnist_logistic_forward)
    out = fwd(x_bf16, w_pad, b_pad)
    jax.block_until_ready(out)

    # Reference with the same bf16-rounded inputs and f32 accumulation
    # (matches the MXU path); tolerance covers accumulation-order differences.
    ref = (x_bf16.astype(jnp.float32)
           @ w_pad[:, :OUT_FEATURES].astype(jnp.float32) + b)
    assert out.shape == (B, OUT_FEATURES)
    assert jnp.allclose(out, ref, atol=1e-2, rtol=1e-2), (
        float(jnp.max(jnp.abs(out - ref))))

    print("KERNEL_OK")
</pallas_src>

<mosaic_0001>
module attributes {stable_mosaic.version = 11 : i64} {
  func.func @linear_kernel(%arg0: i32, %arg1: memref<32x784xbf16, #tpu.memory_space<vmem>>, %arg2: memref<784x128xbf16, #tpu.memory_space<vmem>>, %arg3: memref<1x128xf32, #tpu.memory_space<vmem>>, %arg4: memref<32x128xf32, #tpu.memory_space<vmem>>) attributes {dimension_semantics = [#tpu.dimension_semantics<parallel>], iteration_bounds = array<i64: 2>, scalar_prefetch = 0 : i64, scratch_operands = 0 : i64, tpu.core_type = #tpu.core_type<tc>, window_params = [{transform_indices = @transform_0, window_bounds = array<i64: 32, 784>}, {pipeline_mode = #tpu.pipeline_mode<synchronous>, transform_indices = @transform_1, window_bounds = array<i64: 784, 128>}, {pipeline_mode = #tpu.pipeline_mode<synchronous>, transform_indices = @transform_2, window_bounds = array<i64: 1, 128>}, {transform_indices = @transform_3, window_bounds = array<i64: 32, 128>}]} {
    %c0 = arith.constant 0 : index
    %c0_0 = arith.constant 0 : index
    %0 = vector.load %arg1[%c0, %c0_0] : memref<32x784xbf16, #tpu.memory_space<vmem>>, vector<32x784xbf16>
    %c0_1 = arith.constant 0 : index
    %c0_2 = arith.constant 0 : index
    %1 = vector.load %arg2[%c0_1, %c0_2] : memref<784x128xbf16, #tpu.memory_space<vmem>>, vector<784x128xbf16>
    %cst = arith.constant dense<0.000000e+00> : vector<32x128xf32>
    %2 = tpu.matmul %0, %1, %cst {dimension_numbers = #tpu.dot_dimension_numbers<[1], [0], [0], [1], [0, 0, 1, 1], [], []>} : vector<32x784xbf16>, vector<784x128xbf16>, vector<32x128xf32> -> vector<32x128xf32>
    %c0_3 = arith.constant 0 : index
    %c0_4 = arith.constant 0 : index
    %3 = vector.load %arg3[%c0_3, %c0_4] : memref<1x128xf32, #tpu.memory_space<vmem>>, vector<1x128xf32>
    %4 = vector.broadcast %3 : vector<1x128xf32> to vector<32x128xf32>
    %5 = arith.addf %2, %4 : vector<32x128xf32>
    %c0_5 = arith.constant 0 : index
    %c0_6 = arith.constant 0 : index
    %6 = vector.load %arg4[%c0_5, %c0_6] : memref<32x128xf32, #tpu.memory_space<vmem>>, vector<32x128xf32>
    tpu.vector_store %arg4[%c0_5, %c0_6], %5 {strides = array<i32>} : memref<32x128xf32, #tpu.memory_space<vmem>>, vector<32x128xf32>,
    return
  }
  func.func @transform_0(%arg0: i32) -> (i32, i32) {
    %c0_i32 = arith.constant 0 : i32
    %c0_i32_0 = arith.constant 0 : i32
    return %arg0, %c0_i32 : i32, i32
  }
  func.func @transform_1(%arg0: i32) -> (i32, i32) {
    %c0_i32 = arith.constant 0 : i32
    %c0_i32_0 = arith.constant 0 : i32
    %c0_i32_1 = arith.constant 0 : i32
    return %c0_i32, %c0_i32_0 : i32, i32
  }
  func.func @transform_2(%arg0: i32) -> (i32, i32) {
    %c0_i32 = arith.constant 0 : i32
    %c0_i32_0 = arith.constant 0 : i32
    %c0_i32_1 = arith.constant 0 : i32
    return %c0_i32, %c0_i32_0 : i32, i32
  }
  func.func @transform_3(%arg0: i32) -> (i32, i32) {
    %c0_i32 = arith.constant 0 : i32
    %c0_i32_0 = arith.constant 0 : i32
    return %arg0, %c0_i32 : i32, i32
  }
}

</mosaic_0001>

<llo_original>
// kernel: mnist_logistic_forward.1
$region0: #{mnist_logistic_forward.1}
  #allocation0 [shape = 'u32[]', space=smem, size = 0x4, offset = 0x4, fixed_abs, tag = 'smem constant byte address 0x4 - core index']
  #allocation1 [shape = 'u32[144,128]{1,0:T(1,128)}', space=vmem, size = 0x12000, scoped, tag = 'internal scratch']
  %s0 = inlined_call_operand.hbm [shape: bf16[64,784], index: 0, kind: input, shape index: {}]
  %s1 = inlined_call_operand.hbm [shape: bf16[784,128], index: 1, kind: input, shape index: {}]
  %s2 = inlined_call_operand.vmem [shape: f32[1,128], index: 2, kind: input, shape index: {}]
  %s3 = inlined_call_operand.vmem [shape: f32[64,128], index: 3, kind: output, shape index: {}]
  %s4 = sld [smem:[#allocation0]]
  $region53: #{mnist_logistic_forward.1} parent=0
    _
  %s6 = ssub.s32 1, %s4
  %s7 = scalar_select 0, %s6, %s4
  $region1: #{mnist_logistic_forward.1} parent=0
    #allocation2 [shape = 'u8[114688]{0}', space=vmem, size = 0x1c000, scoped, tag = 'input window, operand 0']
    #allocation3 [shape = 's32[2]{0}', space=sflag, size = 0x8, scoped, tag = 'scoped memory for mnist_logistic_forward.1']
    #allocation4 [shape = 'u8[200704]{0}', space=vmem, size = 0x31000, scoped, tag = 'input window, operand 1, single buffered']
    #allocation5 [shape = 's32[1]{0}', space=sflag, size = 0x4, scoped, tag = 'scoped memory for mnist_logistic_forward.1']
    %8 = vsyncpa [#allocation3], 0
    %s9 = scalar_lea.sflag [#allocation3], 1
    %10 = vsyncpa %s9, 0
    %11 = vsyncpa [#allocation5], 0
    loop: start=0, step=1, limit=4
    $region2: #{mnist_logistic_forward.1} parent=1 // loop_pre_header
      _
    $region3: #{mnist_logistic_forward.1} parent=1 // loop_header
      %s13 = sphi 0, %s17
      %p14 = scmp.ge.s32.totalorder %s13, 4
      %s23 = sphi 0, %s25
      %s26 = sphi 0, %s23
      %s27 = sphi 0, %s26
      %s43 = sphi 0, %s27
      %s47 = sphi 0, %s47
      %s49 = sphi 0, %s47
      %s50 = sphi 0, %s49
      %s64 = sphi 0, %s50
      %s68 = sphi 0, %s68
      %s70 = sphi 0, %s68
      %s71 = sphi 0, %s70
      %s85 = sphi 0, %s71
      %s91 = sphi 0, %s93
      %s94 = sphi 0, %s91
      %s95 = sphi 0, %s94
      %s111 = sphi 0, %s95
    $region4: #{mnist_logistic_forward.1} parent=1 // loop_header_branch
      %16 = sbr.rel (%p14) target = $region8
    $region5: #{mnist_logistic_forward.1} parent=1 // loop_body
      %s18 = ssub.s32 %s13, 1
      %s19 = ssub.s32 %s13, 2
      %s20 = sadd.s32 %s13, 1
      %s21 = ssub.s32 %s13, %s20
      %p22 = scmp.eq.s32.totalorder %s21, 0
      %s24 = sadd.s32 %s23, 1
      %s25 = scalar_select %p22, %s23, %s24
      %p28 = pneg %p22
      %p29 = scmp.eq.s32.totalorder %s13, 1
      %p30 = por %p28, %p29
      %p31 = scmp.ne.s32.totalorder %s23, %s26
      %p32 = scmp.eq.s32.totalorder %s13, 0
      %p33 = por %p31, %p32
      %p34 = scmp.ne.s32.totalorder %s23, %s26
      %p35 = scmp.eq.s32.totalorder %s18, 1
      %p36 = por %p34, %p35
      %p37 = scmp.ne.s32.totalorder %s26, %s27
      %p38 = scmp.eq.s32.totalorder %s18, 0
      %p39 = por %p37, %p38
      %p40 = scmp.ne.s32.totalorder %s26, %s27
      %p41 = scmp.eq.s32.totalorder %s19, 1
      %p42 = por %p40, %p41
      %p44 = scmp.ne.s32.totalorder %s27, %s43
      %p45 = scmp.eq.s32.totalorder %s19, 0
      %p46 = por %p44, %p45
      %s48 = sadd.s32 %s47, 1
      %p51 = scmp.eq.s32.totalorder %s13, 1
      %p52 = scmp.ne.s32.totalorder %s47, %s49
      %p53 = scmp.eq.s32.totalorder %s13, 0
      %p54 = por %p52, %p53
      %p55 = scmp.ne.s32.totalorder %s47, %s49
      %p56 = scmp.eq.s32.totalorder %s18, 1
      %p57 = por %p55, %p56
      %p58 = scmp.ne.s32.totalorder %s49, %s50
      %p59 = scmp.eq.s32.totalorder %s18, 0
      %p60 = por %p58, %p59
      %p61 = scmp.ne.s32.totalorder %s49, %s50
      %p62 = scmp.eq.s32.totalorder %s19, 1
      %p63 = por %p61, %p62
      %p65 = scmp.ne.s32.totalorder %s50, %s64
      %p66 = scmp.eq.s32.totalorder %s19, 0
      %p67 = por %p65, %p66
      %s69 = sadd.s32 %s68, 1
      %p72 = scmp.eq.s32.totalorder %s13, 1
      %p73 = scmp.ne.s32.totalorder %s68, %s70
      %p74 = scmp.eq.s32.totalorder %s13, 0
      %p75 = por %p73, %p74
      %p76 = scmp.ne.s32.totalorder %s68, %s70
      %p77 = scmp.eq.s32.totalorder %s18, 1
      %p78 = por %p76, %p77
      %p79 = scmp.ne.s32.totalorder %s70, %s71
      %p80 = scmp.eq.s32.totalorder %s18, 0
      %p81 = por %p79, %p80
      %p82 = scmp.ne.s32.totalorder %s70, %s71
      %p83 = scmp.eq.s32.totalorder %s19, 1
      %p84 = por %p82, %p83
      %p86 = scmp.ne.s32.totalorder %s71, %s85
      %p87 = scmp.eq.s32.totalorder %s19, 0
      %p88 = por %p86, %p87
      %s89 = ssub.s32 %s13, %s20
      %p90 = scmp.eq.s32.totalorder %s89, 0
      %s92 = sadd.s32 %s91, 1
      %s93 = scalar_select %p90, %s91, %s92
      %p96 = pneg %p90
      %p97 = scmp.eq.s32.totalorder %s13, 1
      %p98 = por %p96, %p97
      %p99 = scmp.ne.s32.totalorder %s91, %s94
      %p100 = scmp.eq.s32.totalorder %s13, 0
      %p101 = por %p99, %p100
      %p102 = scmp.ne.s32.totalorder %s91, %s94
      %p103 = scmp.eq.s32.totalorder %s18, 1
      %p104 = por %p102, %p103
      %p105 = scmp.ne.s32.totalorder %s94, %s95
      %p106 = scmp.eq.s32.totalorder %s18, 0
      %p107 = por %p105, %p106
      %p108 = scmp.ne.s32.totalorder %s94, %s95
      %p109 = scmp.eq.s32.totalorder %s19, 1
      %p110 = por %p108, %p109
      %p112 = scmp.ne.s32.totalorder %s95, %s111
      %p113 = scmp.eq.s32.totalorder %s19, 0
      %p114 = por %p112, %p113
      %p115 = scmp.le.s32.totalorder 1, %s13
      %p116 = scmp.lt.s32.totalorder %s13, 3
      %p117 = pnand %p115, %p116
      %p118 = pneg %p117
      // Predicated region
      $region9: #{mnist_logistic_forward.1} parent=5 // pred_check
        _
      $region10: #{mnist_logistic_forward.1} parent=5 // pred_check_branch
        %120 = sbr.rel (%p117) target = $region12
      $region11: #{mnist_logistic_forward.1} parent=5 // pred_region
        %s121 = ssub.s32 %s13, 1
        // Predicated region
        $region13: #{mnist_logistic_forward.1} parent=11 // pred_check
          %p122 = pneg %p60
        $region14: #{mnist_logistic_forward.1} parent=11 // pred_check_branch
          %124 = sbr.rel (%p122) target = $region16
        $region15: #{mnist_logistic_forward.1} parent=11 // pred_region
          %s126 = ssub.s32 6272, 6272
          %127 = vsyncadd [#allocation5], %s126
          %s128 = sshll.u32 [#allocation4], 4
          %s129 = int_to_ptr.vmem [resolvable:$true] %s128
          %134 = dma.hbm_to_vmem [thread:$0]  %s1, 6272, %s129, [#allocation5], 64, 64, 4
        $region16: #{mnist_logistic_forward.1} parent=11 // pred_fallthru
          _
        // Predicated region
        $region17: #{mnist_logistic_forward.1} parent=11 // pred_check
          %p135 = pneg %p81
        $region18: #{mnist_logistic_forward.1} parent=11 // pred_check_branch
          %137 = sbr.rel (%p135) target = $region20
        $region19: #{mnist_logistic_forward.1} parent=11 // pred_region
          _
        $region20: #{mnist_logistic_forward.1} parent=11 // pred_fallthru
          _
      $region12: #{mnist_logistic_forward.1} parent=5 // pred_fallthru
        _
      %p138 = scmp.lt.s32.totalorder %s13, 2
      // Predicated region
      $region21: #{mnist_logistic_forward.1} parent=5 // pred_check
        %p139 = pneg %p138
      $region22: #{mnist_logistic_forward.1} parent=5 // pred_check_branch
        %141 = sbr.rel (%p139) target = $region24
      $region23: #{mnist_logistic_forward.1} parent=5 // pred_region
        // Predicated region
        $region25: #{mnist_logistic_forward.1} parent=23 // pred_check
          %p142 = pneg %p33
        $region26: #{mnist_logistic_forward.1} parent=23 // pred_check_branch
          %144 = sbr.rel (%p142) target = $region28
        $region27: #{mnist_logistic_forward.1} parent=23 // pred_region
          %s145 = sand.u32 %s23, 1
          %s146 = scalar_lea.sflag [#allocation3], %s145
          %s147 = sand.u32 %s23, 1
          %s148 = smul.addr %s147, 112
          %s149 = scalar_lea.vmem [#allocation2], %s148
          %s150 = smul.u32 4, %s13
          %s152 = ssub.s32 1792, 1792
          %153 = vsyncadd %s146, %s152
          %s154 = smul.addr %s150, 7
          %s155 = smul.addr %s154, 64
          %s156 = scalar_lea.hbm %s0, %s155
          %s157 = sshll.u32 %s149, 4
          %s158 = int_to_ptr.vmem [resolvable:$true] %s157
          %163 = dma.hbm_to_vmem [thread:$0]  %s156, 1792, %s158, %s146, 448, 448, 28
        $region28: #{mnist_logistic_forward.1} parent=23 // pred_fallthru
          _
      $region24: #{mnist_logistic_forward.1} parent=5 // pred_fallthru
        _
      %p164 = scmp.le.s32.totalorder 1, %s13
      %p165 = scmp.lt.s32.totalorder %s13, 3
      %p166 = pnand %p164, %p165
      %p167 = pneg %p166
      // Predicated region
      $region29: #{mnist_logistic_forward.1} parent=5 // pred_check
        _
      $region30: #{mnist_logistic_forward.1} parent=5 // pred_check_branch
        %169 = sbr.rel (%p166) target = $region32
      $region31: #{mnist_logistic_forward.1} parent=5 // pred_region
        %s170 = ssub.s32 %s13, 1
        %s171 = sand.u32 %s26, 1
        %s172 = scalar_lea.sflag [#allocation3], %s171
        %s173 = sand.u32 %s26, 1
        %s174 = smul.addr %s173, 112
        %s175 = scalar_lea.vmem [#allocation2], %s174
        // Predicated region
        $region33: #{mnist_logistic_forward.1} parent=31 // pred_check
          %p176 = pneg %p39
        $region34: #{mnist_logistic_forward.1} parent=31 // pred_check_branch
          %178 = sbr.rel (%p176) target = $region36
        $region35: #{mnist_logistic_forward.1} parent=31 // pred_region
          %179 = dma.done %s172, 1792
        $region36: #{mnist_logistic_forward.1} parent=31 // pred_fallthru
          _
        // Predicated region
        $region37: #{mnist_logistic_forward.1} parent=31 // pred_check
          %p180 = pneg %p60
        $region38: #{mnist_logistic_forward.1} parent=31 // pred_check_branch
          %182 = sbr.rel (%p180) target = $region40
        $region39: #{mnist_logistic_forward.1} parent=31 // pred_region
          %183 = dma.done [#allocation5], 6272
        $region40: #{mnist_logistic_forward.1} parent=31 // pred_fallthru
          _
        %s184 = sand.u32 %s26, 1
        %s185 = scalar_lea.sflag [#allocation3], %s184
        %s186 = sand.u32 %s26, 1
        %s187 = smul.addr %s186, 112
        %s188 = scalar_lea.vmem [#allocation2], %s187
        %p189 = pneg %p39
        %p190 = pneg %p36
        %p191 = pneg %p60
        %p192 = pneg %p57
        %p193 = pneg %p81
        %p194 = pneg %p78
        %p195 = pneg %p107
        %p196 = pneg %p104
        %s197 = smul.u32 4, %s18
        %p198 = scmp.lt.s32.totalorder %s197, 7
        %s199 = scalar_select %p198, %s197, 7
        %s200 = smul.addr %s199, 8
        %s201 = scalar_lea.vmem %s3, %s200
        %s202 = smul.u32 4, %s18
        %s203 = smul.u32 4, %s18
        %p204 = scmp.lt.s32.totalorder %s203, 7
        %s205 = scalar_select %p204, %s203, 7
        %s206 = smul.addr %s205, 8
        %s207 = scalar_lea.vmem %s3, %s206
        %s208 = smul.u32 4, %s18
        %v210 = vld [vmem:[%s175] sm:$0xff]
        %v211 = vld [vmem:[%s175 + $0x8] sm:$0xff]
        %v212 = vld [vmem:[%s175 + $0x10] sm:$0xff]
        %v213 = vld [vmem:[%s175 + $0x18] sm:$0xf]
        %v214 = vld [vmem:[%s175 + $0x1c] sm:$0xff]
        %v215 = vld [vmem:[%s175 + $0x24] sm:$0xff]
        %v216 = vld [vmem:[%s175 + $0x2c] sm:$0xff]
        %v217 = vld [vmem:[%s175 + $0x34] sm:$0xf]
        %v218 = vld [vmem:[%s175 + $0x38] sm:$0xff]
        %v219 = vld [vmem:[%s175 + $0x40] sm:$0xff]
        %v220 = vld [vmem:[%s175 + $0x48] sm:$0xff]
        %v221 = vld [vmem:[%s175 + $0x50] sm:$0xf]
        %v222 = vld [vmem:[%s175 + $0x54] sm:$0xff]
        %v223 = vld [vmem:[%s175 + $0x5c] sm:$0xff]
        %v224 = vld [vmem:[%s175 + $0x64] sm:$0xff]
        %v225 = vld [vmem:[%s175 + $0x6c] sm:$0xf]
        %v226 = vld [vmem:[#allocation4] sm:$0xf]
        %v227 = vld [vmem:[#allocation4 + $0x4] sm:$0xf]
        %v228 = vld [vmem:[#allocation4 + $0x8] sm:$0xf]
        %v229 = vld [vmem:[#allocation4 + $0xc] sm:$0xf]
        %v230 = vld [vmem:[#allocation4 + $0x10] sm:$0xf]
        %v231 = vld [vmem:[#allocation4 + $0x14] sm:$0xf]
        %v232 = vld [vmem:[#allocation4 + $0x18] sm:$0xf]
        %v233 = vld [vmem:[#allocation4 + $0x1c] sm:$0xf]
        %v234 = vld [vmem:[#allocation4 + $0x20] sm:$0xf]
        %v235 = vld [vmem:[#allocation4 + $0x24] sm:$0xf]
        %v236 = vld [vmem:[#allocation4 + $0x28] sm:$0xf]
        %v237 = vld [vmem:[#allocation4 + $0x2c] sm:$0xf]
        %v238 = vld [vmem:[#allocation4 + $0x30] sm:$0xf]
        %v239 = vld [vmem:[#allocation4 + $0x34] sm:$0xf]
        %v240 = vld [vmem:[#allocation4 + $0x38] sm:$0xf]
        %v241 = vld [vmem:[#allocation4 + $0x3c] sm:$0xf]
        %v242 = vld [vmem:[#allocation4 + $0x40] sm:$0xf]
        %v243 = vld [vmem:[#allocation4 + $0x44] sm:$0xf]
        %v244 = vld [vmem:[#allocation4 + $0x48] sm:$0xf]
        %v245 = vld [vmem:[#allocation4 + $0x4c] sm:$0xf]
        %v246 = vld [vmem:[#allocation4 + $0x50] sm:$0xf]
        %v247 = vld [vmem:[#allocation4 + $0x54] sm:$0xf]
        %v248 = vld [vmem:[#allocation4 + $0x58] sm:$0xf]
        %v249 = vld [vmem:[#allocation4 + $0x5c] sm:$0xf]
        %v250 = vld [vmem:[#allocation4 + $0x60] sm:$0xf]
        %v251 = vld [vmem:[#allocation4 + $0x64] sm:$0xf]
        %v252 = vld [vmem:[#allocation4 + $0x68] sm:$0xf]
        %v253 = vld [vmem:[#allocation4 + $0x6c] sm:$0xf]
        %v254 = vld [vmem:[#allocation4 + $0x70] sm:$0xf]
        %v255 = vld [vmem:[#allocation4 + $0x74] sm:$0xf]
        %v256 = vld [vmem:[#allocation4 + $0x78] sm:$0xf]
        %v257 = vld [vmem:[#allocation4 + $0x7c] sm:$0xf]
        %v258 = vld [vmem:[#allocation4 + $0x80] sm:$0xf]
        %v259 = vld [vmem:[#allocation4 + $0x84] sm:$0xf]
        %v260 = vld [vmem:[#allocation4 + $0x88] sm:$0xf]
        %v261 = vld [vmem:[#allocation4 + $0x8c] sm:$0xf]
        %v262 = vld [vmem:[#allocation4 + $0x90] sm:$0xf]
        %v263 = vld [vmem:[#allocation4 + $0x94] sm:$0xf]
        %v264 = vld [vmem:[#allocation4 + $0x98] sm:$0xf]
        %v265 = vld [vmem:[#allocation4 + $0x9c] sm:$0xf]
        %v266 = vld [vmem:[#allocation4 + $0xa0] sm:$0xf]
        %v267 = vld [vmem:[#allocation4 + $0xa4] sm:$0xf]
        %v268 = vld [vmem:[#allocation4 + $0xa8] sm:$0xf]
        %v269 = vld [vmem:[#allocation4 + $0xac] sm:$0xf]
        %v270 = vld [vmem:[#allocation4 + $0xb0] sm:$0xf]
        %v271 = vld [vmem:[#allocation4 + $0xb4] sm:$0xf]
        %v272 = vld [vmem:[#allocation4 + $0xb8] sm:$0xf]
        %v273 = vld [vmem:[#allocation4 + $0xbc] sm:$0xf]
        %v274 = vld [vmem:[#allocation4 + $0xc0] sm:$0xf]
        %v275 = vld [vmem:[#allocation4 + $0xc4] sm:$0xf]
        %v276 = vld [vmem:[#allocation4 + $0xc8] sm:$0xf]
        %v277 = vld [vmem:[#allocation4 + $0xcc] sm:$0xf]
        %v278 = vld [vmem:[#allocation4 + $0xd0] sm:$0xf]
        %v279 = vld [vmem:[#allocation4 + $0xd4] sm:$0xf]
        %v280 = vld [vmem:[#allocation4 + $0xd8] sm:$0xf]
        %v281 = vld [vmem:[#allocation4 + $0xdc] sm:$0xf]
        %v282 = vld [vmem:[#allocation4 + $0xe0] sm:$0xf]
        %v283 = vld [vmem:[#allocation4 + $0xe4] sm:$0xf]
        %v284 = vld [vmem:[#allocation4 + $0xe8] sm:$0xf]
        %v285 = vld [vmem:[#allocation4 + $0xec] sm:$0xf]
        %v286 = vld [vmem:[#allocation4 + $0xf0] sm:$0xf]
        %v287 = vld [vmem:[#allocation4 + $0xf4] sm:$0xf]
        %v288 = vld [vmem:[#allocation4 + $0xf8] sm:$0xf]
        %v289 = vld [vmem:[#allocation4 + $0xfc] sm:$0xf]
        %v290 = vld [vmem:[#allocation4 + $0x100] sm:$0xf]
        %v291 = vld [vmem:[#allocation4 + $0x104] sm:$0xf]
        %v292 = vld [vmem:[#allocation4 + $0x108] sm:$0xf]
        %v293 = vld [vmem:[#allocation4 + $0x10c] sm:$0xf]
        %v294 = vld [vmem:[#allocation4 + $0x110] sm:$0xf]
        %v295 = vld [vmem:[#allocation4 + $0x114] sm:$0xf]
        %v296 = vld [vmem:[#allocation4 + $0x118] sm:$0xf]
        %v297 = vld [vmem:[#allocation4 + $0x11c] sm:$0xf]
        %v298 = vld [vmem:[#allocation4 + $0x120] sm:$0xf]
        %v299 = vld [vmem:[#allocation4 + $0x124] sm:$0xf]
        %v300 = vld [vmem:[#allocation4 + $0x128] sm:$0xf]
        %v301 = vld [vmem:[#allocation4 + $0x12c] sm:$0xf]
        %v302 = vld [vmem:[#allocation4 + $0x130] sm:$0xf]
        %v303 = vld [vmem:[#allocation4 + $0x134] sm:$0xf]
        %v304 = vld [vmem:[#allocation4 + $0x138] sm:$0xf]
        %v305 = vld [vmem:[#allocation4 + $0x13c] sm:$0xf]
        %v306 = vld [vmem:[#allocation4 + $0x140] sm:$0xf]
        %v307 = vld [vmem:[#allocation4 + $0x144] sm:$0xf]
        %v308 = vld [vmem:[#allocation4 + $0x148] sm:$0xf]
        %v309 = vld [vmem:[#allocation4 + $0x14c] sm:$0xf]
        %v310 = vld [vmem:[#allocation4 + $0x150] sm:$0xf]
        %v311 = vld [vmem:[#allocation4 + $0x154] sm:$0xf]
        %v312 = vld [vmem:[#allocation4 + $0x158] sm:$0xf]
        %v313 = vld [vmem:[#allocation4 + $0x15c] sm:$0xf]
        %v314 = vld [vmem:[#allocation4 + $0x160] sm:$0xf]
        %v315 = vld [vmem:[#allocation4 + $0x164] sm:$0xf]
        %v316 = vld [vmem:[#allocation4 + $0x168] sm:$0xf]
        %v317 = vld [vmem:[#allocation4 + $0x16c] sm:$0xf]
        %v318 = vld [vmem:[#allocation4 + $0x170] sm:$0xf]
        %v319 = vld [vmem:[#allocation4 + $0x174] sm:$0xf]
        %v320 = vld [vmem:[#allocation4 + $0x178] sm:$0xf]
        %v321 = vld [vmem:[#allocation4 + $0x17c] sm:$0xf]
        %v322 = vld [vmem:[#allocation4 + $0x180] sm:$0xf]
        %v323 = vld [vmem:[#allocation4 + $0x184] sm:$0xf]
        %v324 = vld [vmem:[%s2] sm:$0x1]
        %v326 = vlaneseq
        %v327 = vshrl.u32 %v326, 7
        %v328 = vsub.s32 0, %v327
        %v329 = vrot.slane %v324, %v328
        %v347 = vunpack.c.l.b16 %v210
        %v348 = vunpack.c.h.b16 %v210
        %v349 = vunpack.c.l.b16 %v211
        %v350 = vunpack.c.h.b16 %v211
        %v351 = vunpack.c.l.b16 %v212
        %v352 = vunpack.c.h.b16 %v212
        %v353 = vunpack.c.l.b16 %v213
        %v354 = vunpack.c.l.b16 %v214
        %v355 = vunpack.c.h.b16 %v214
        %v356 = vunpack.c.l.b16 %v215
        %v357 = vunpack.c.h.b16 %v215
        %v358 = vunpack.c.l.b16 %v216
        %v359 = vunpack.c.h.b16 %v216
        %v360 = vunpack.c.l.b16 %v217
        %v361 = vunpack.c.l.b16 %v218
        %v362 = vunpack.c.h.b16 %v218
        %v363 = vunpack.c.l.b16 %v219
        %v364 = vunpack.c.h.b16 %v219
        %v365 = vunpack.c.l.b16 %v220
        %v366 = vunpack.c.h.b16 %v220
        %v367 = vunpack.c.l.b16 %v221
        %v368 = vunpack.c.l.b16 %v222
        %v369 = vunpack.c.h.b16 %v222
        %v370 = vunpack.c.l.b16 %v223
        %v371 = vunpack.c.h.b16 %v223
        %v372 = vunpack.c.l.b16 %v224
        %v373 = vunpack.c.h.b16 %v224
        %v374 = vunpack.c.l.b16 %v225
        %v375 = vpack.c.b16 %v354, %v347
        %v376 = vpack.c.b16 %v355, %v348
        %v377 = vpack.c.b16 %v356, %v349
        %v378 = vpack.c.b16 %v357, %v350
        %v379 = vpack.c.b16 %v358, %v351
        %v380 = vpack.c.b16 %v359, %v352
        %v381 = vpack.c.b16 %v360, %v353
        %v382 = vpack.c.b16 %v368, %v361
        %v383 = vpack.c.b16 %v369, %v362
        %v384 = vpack.c.b16 %v370, %v363
        %v385 = vpack.c.b16 %v371, %v364
        %v386 = vpack.c.b16 %v372, %v365
        %v387 = vpack.c.b16 %v373, %v366
        %v388 = vpack.c.b16 %v374, %v367
        %v499 = vunpack.c.l.b16 %v226
        %v500 = vunpack.c.l.b16 %v227
        %v501 = vunpack.c.l.b16 %v228
        %v502 = vunpack.c.l.b16 %v229
        %v503 = vunpack.c.l.b16 %v230
        %v504 = vunpack.c.l.b16 %v231
        %v505 = vunpack.c.l.b16 %v232
        %v506 = vunpack.c.l.b16 %v233
        %v507 = vunpack.c.l.b16 %v234
        %v508 = vunpack.c.l.b16 %v235
        %v509 = vunpack.c.l.b16 %v236
        %v510 = vunpack.c.l.b16 %v237
        %v511 = vunpack.c.l.b16 %v238
        %v512 = vunpack.c.l.b16 %v239
        %v513 = vunpack.c.l.b16 %v240
        %v514 = vunpack.c.l.b16 %v241
        %v515 = vunpack.c.l.b16 %v242
        %v516 = vunpack.c.l.b16 %v243
        %v517 = vunpack.c.l.b16 %v244
        %v518 = vunpack.c.l.b16 %v245
        %v519 = vunpack.c.l.b16 %v246
        %v520 = vunpack.c.l.b16 %v247
        %v521 = vunpack.c.l.b16 %v248
        %v522 = vunpack.c.l.b16 %v249
        %v523 = vunpack.c.l.b16 %v250
        %v524 = vunpack.c.l.b16 %v251
        %v525 = vunpack.c.l.b16 %v252
        %v526 = vunpack.c.l.b16 %v253
        %v527 = vunpack.c.l.b16 %v254
        %v528 = vunpack.c.l.b16 %v255
        %v529 = vunpack.c.l.b16 %v256
        %v530 = vunpack.c.l.b16 %v257
        %v531 = vunpack.c.l.b16 %v258
        %v532 = vunpack.c.l.b16 %v259
        %v533 = vunpack.c.l.b16 %v260
        %v534 = vunpack.c.l.b16 %v261
        %v535 = vunpack.c.l.b16 %v262
        %v536 = vunpack.c.l.b16 %v263
        %v537 = vunpack.c.l.b16 %v264
        %v538 = vunpack.c.l.b16 %v265
        %v539 = vunpack.c.l.b16 %v266
        %v540 = vunpack.c.l.b16 %v267
        %v541 = vunpack.c.l.b16 %v268
        %v542 = vunpack.c.l.b16 %v269
        %v543 = vunpack.c.l.b16 %v270
        %v544 = vunpack.c.l.b16 %v271
        %v545 = vunpack.c.l.b16 %v272
        %v546 = vunpack.c.l.b16 %v273
        %v547 = vunpack.c.l.b16 %v274
        %v548 = vunpack.c.l.b16 %v275
        %v549 = vunpack.c.l.b16 %v276
        %v550 = vunpack.c.l.b16 %v277
        %v551 = vunpack.c.l.b16 %v278
        %v552 = vunpack.c.l.b16 %v279
        %v553 = vunpack.c.l.b16 %v280
        %v554 = vunpack.c.l.b16 %v281
        %v555 = vunpack.c.l.b16 %v282
        %v556 = vunpack.c.l.b16 %v283
        %v557 = vunpack.c.l.b16 %v284
        %v558 = vunpack.c.l.b16 %v285
        %v559 = vunpack.c.l.b16 %v286
        %v560 = vunpack.c.l.b16 %v287
        %v561 = vunpack.c.l.b16 %v288
        %v562 = vunpack.c.l.b16 %v289
        %v563 = vunpack.c.l.b16 %v290
        %v564 = vunpack.c.l.b16 %v291
        %v565 = vunpack.c.l.b16 %v292
        %v566 = vunpack.c.l.b16 %v293
        %v567 = vunpack.c.l.b16 %v294
        %v568 = vunpack.c.l.b16 %v295
        %v569 = vunpack.c.l.b16 %v296
        %v570 = vunpack.c.l.b16 %v297
        %v571 = vunpack.c.l.b16 %v298
        %v572 = vunpack.c.l.b16 %v299
        %v573 = vunpack.c.l.b16 %v300
        %v574 = vunpack.c.l.b16 %v301
        %v575 = vunpack.c.l.b16 %v302
        %v576 = vunpack.c.l.b16 %v303
        %v577 = vunpack.c.l.b16 %v304
        %v578 = vunpack.c.l.b16 %v305
        %v579 = vunpack.c.l.b16 %v306
        %v580 = vunpack.c.l.b16 %v307
        %v581 = vunpack.c.l.b16 %v308
        %v582 = vunpack.c.l.b16 %v309
        %v583 = vunpack.c.l.b16 %v310
        %v584 = vunpack.c.l.b16 %v311
        %v585 = vunpack.c.l.b16 %v312
        %v586 = vunpack.c.l.b16 %v313
        %v587 = vunpack.c.l.b16 %v314
        %v588 = vunpack.c.l.b16 %v315
        %v589 = vunpack.c.l.b16 %v316
        %v590 = vunpack.c.l.b16 %v317
        %v591 = vunpack.c.l.b16 %v318
        %v592 = vunpack.c.l.b16 %v319
        %v593 = vunpack.c.l.b16 %v320
        %v594 = vunpack.c.l.b16 %v321
        %v595 = vunpack.c.l.b16 %v322
        %v596 = vunpack.c.l.b16 %v323
        %v597 = vpack.c.b16 %v500, %v499
        %v598 = vpack.c.b16 %v502, %v501
        %v599 = vpack.c.b16 %v504, %v503
        %v600 = vpack.c.b16 %v506, %v505
        %v601 = vpack.c.b16 %v508, %v507
        %v602 = vpack.c.b16 %v510, %v509
        %v603 = vpack.c.b16 %v512, %v511
        %v604 = vpack.c.b16 %v514, %v513
        %v605 = vpack.c.b16 %v516, %v515
        %v606 = vpack.c.b16 %v518, %v517
        %v607 = vpack.c.b16 %v520, %v519
        %v608 = vpack.c.b16 %v522, %v521
        %v609 = vpack.c.b16 %v524, %v523
        %v610 = vpack.c.b16 %v526, %v525
        %v611 = vpack.c.b16 %v528, %v527
        %v612 = vpack.c.b16 %v530, %v529
        %v613 = vpack.c.b16 %v532, %v531
        %v614 = vpack.c.b16 %v534, %v533
        %v615 = vpack.c.b16 %v536, %v535
        %v616 = vpack.c.b16 %v538, %v537
        %v617 = vpack.c.b16 %v540, %v539
        %v618 = vpack.c.b16 %v542, %v541
        %v619 = vpack.c.b16 %v544, %v543
        %v620 = vpack.c.b16 %v546, %v545
        %v621 = vpack.c.b16 %v548, %v547
        %v622 = vpack.c.b16 %v550, %v549
        %v623 = vpack.c.b16 %v552, %v551
        %v624 = vpack.c.b16 %v554, %v553
        %v625 = vpack.c.b16 %v556, %v555
        %v626 = vpack.c.b16 %v558, %v557
        %v627 = vpack.c.b16 %v560, %v559
        %v628 = vpack.c.b16 %v562, %v561
        %v629 = vpack.c.b16 %v564, %v563
        %v630 = vpack.c.b16 %v566, %v565
        %v631 = vpack.c.b16 %v568, %v567
        %v632 = vpack.c.b16 %v570, %v569
        %v633 = vpack.c.b16 %v572, %v571
        %v634 = vpack.c.b16 %v574, %v573
        %v635 = vpack.c.b16 %v576, %v575
        %v636 = vpack.c.b16 %v578, %v577
        %v637 = vpack.c.b16 %v580, %v579
        %v638 = vpack.c.b16 %v582, %v581
        %v639 = vpack.c.b16 %v584, %v583
        %v640 = vpack.c.b16 %v586, %v585
        %v641 = vpack.c.b16 %v588, %v587
        %v642 = vpack.c.b16 %v590, %v589
        %v643 = vpack.c.b16 %v592, %v591
        %v644 = vpack.c.b16 %v594, %v593
        %v645 = vpack.c.b16 %v596, %v595
        %vm695 = vcmask 130048
        %v697 = vsel %vm695, %v381, 0
        %v700 = vsel %vm695, %v388, 0
        %702 = vmatprep.subr.bf16.mxu0 0
        %703 = vmatpush1.bf16.msra.mxu0 %v597
        %704 = vmatprep.subr.bf16.mxu0 0
        %705 = vmatpush1.bf16.msra.mxu0 %v598
        %706 = vmatprep.subr.bf16.mxu0 0
        %707 = vmatpush1.bf16.msra.mxu0 %v599
        %708 = vmatprep.subr.bf16.mxu0 0
        %709 = vmatpush1.bf16.msra.mxu0 %v600
        %710 = vmatprep.subr.bf16.mxu0 0
        %711 = vmatpush1.bf16.msra.mxu0 %v601
        %712 = vmatprep.subr.bf16.mxu0 0
        %713 = vmatpush1.bf16.msra.mxu0 %v602
        %714 = vmatprep.subr.bf16.mxu0 0
        %715 = vmatpush1.bf16.msra.mxu0 %v603
        %716 = vmatprep.subr.bf16.mxu0 0
        %717 = vmatpush1.bf16.msra.mxu0 %v604
        %718 = vmatprep.subr.bf16.mxu0 0
        %719 = vmatpush1.bf16.msra.mxu0 %v605
        %720 = vmatprep.subr.bf16.mxu0 0
        %721 = vmatpush1.bf16.msra.mxu0 %v606
        %722 = vmatprep.subr.bf16.mxu0 0
        %723 = vmatpush1.bf16.msra.mxu0 %v607
        %724 = vmatprep.subr.bf16.mxu0 0
        %725 = vmatpush1.bf16.msra.mxu0 %v608
        %726 = vmatprep.subr.bf16.mxu0 0
        %727 = vmatpush1.bf16.msra.mxu0 %v609
        %728 = vmatprep.subr.bf16.mxu0 0
        %729 = vmatpush1.bf16.msra.mxu0 %v610
        %730 = vmatprep.subr.bf16.mxu0 0
        %731 = vmatpush1.bf16.msra.mxu0 %v611
        %732 = vmatprep.subr.bf16.mxu0 0
        %733 = vmatpush1.bf16.msra.mxu0 %v612
        %734 = vmatprep.mubr.bf16.mxu0 %v376
        %735 = vmatmul.mubr.bf16.gmra.mrb[0].mxu0 %v375
        %v736 = vpop.f32.mrb[0].mxu0
        %v737 = vadd.f32 %v329, %v736
        %v738 = vpop.f32.mrb[0].mxu0
        %v739 = vpop.f32.mrb[0].mxu0
        %v740 = vadd.f32 %v329, %v739
        %v741 = vpop.f32.mrb[0].mxu0
        %742 = vmatprep.mubr.bf16.mxu0 %v383
        %743 = vmatmul.mubr.bf16.gmra.mrb[0].mxu0 %v382
        %v744 = vpop.f32.mrb[0].mxu0
        %v745 = vadd.f32 %v329, %v744
        %v746 = vpop.f32.mrb[0].mxu0
        %v747 = vpop.f32.mrb[0].mxu0
        %v748 = vadd.f32 %v329, %v747
        %v749 = vpop.f32.mrb[0].mxu0
        %750 = vdwg.mxu0
        %751 = vmatprep.subr.bf16.mxu0 0
        %752 = vmatpush1.bf16.msra.mxu0 %v613
        %753 = vmatprep.subr.bf16.mxu0 0
        %754 = vmatpush1.bf16.msra.mxu0 %v614
        %755 = vmatprep.subr.bf16.mxu0 0
        %756 = vmatpush1.bf16.msra.mxu0 %v615
        %757 = vmatprep.subr.bf16.mxu0 0
        %758 = vmatpush1.bf16.msra.mxu0 %v616
        %759 = vmatprep.subr.bf16.mxu0 0
        %760 = vmatpush1.bf16.msra.mxu0 %v617
        %761 = vmatprep.subr.bf16.mxu0 0
        %762 = vmatpush1.bf16.msra.mxu0 %v618
        %763 = vmatprep.subr.bf16.mxu0 0
        %764 = vmatpush1.bf16.msra.mxu0 %v619
        %765 = vmatprep.subr.bf16.mxu0 0
        %766 = vmatpush1.bf16.msra.mxu0 %v620
        %767 = vmatprep.subr.bf16.mxu0 0
        %768 = vmatpush1.bf16.msra.mxu0 %v621
        %769 = vmatprep.subr.bf16.mxu0 0
        %770 = vmatpush1.bf16.msra.mxu0 %v622
        %771 = vmatprep.subr.bf16.mxu0 0
        %772 = vmatpush1.bf16.msra.mxu0 %v623
        %773 = vmatprep.subr.bf16.mxu0 0
        %774 = vmatpush1.bf16.msra.mxu0 %v624
        %775 = vmatprep.subr.bf16.mxu0 0
        %776 = vmatpush1.bf16.msra.mxu0 %v625
        %777 = vmatprep.subr.bf16.mxu0 0
        %778 = vmatpush1.bf16.msra.mxu0 %v626
        %779 = vmatprep.subr.bf16.mxu0 0
        %780 = vmatpush1.bf16.msra.mxu0 %v627
        %781 = vmatprep.subr.bf16.mxu0 0
        %782 = vmatpush1.bf16.msra.mxu0 %v628
        %783 = vmatprep.mubr.bf16.mxu0 %v378
        %784 = vmatmul.mubr.bf16.gmra.mrb[0].mxu0 %v377
        %v785 = vpop.f32.mrb[0].mxu0
        %v786 = vadd.f32 %v737, %v785
        %v787 = vpop.f32.mrb[0].mxu0
        %v788 = vpop.f32.mrb[0].mxu0
        %v789 = vadd.f32 %v740, %v788
        %v790 = vpop.f32.mrb[0].mxu0
        %791 = vmatprep.mubr.bf16.mxu0 %v385
        %792 = vmatmul.mubr.bf16.gmra.mrb[0].mxu0 %v384
        %v793 = vpop.f32.mrb[0].mxu0
        %v794 = vadd.f32 %v745, %v793
        %v795 = vpop.f32.mrb[0].mxu0
        %v796 = vpop.f32.mrb[0].mxu0
        %v797 = vadd.f32 %v748, %v796
        %v798 = vpop.f32.mrb[0].mxu0
        %799 = vdwg.mxu0
        %800 = vmatprep.subr.bf16.mxu0 0
        %801 = vmatpush1.bf16.msra.mxu0 %v629
        %802 = vmatprep.subr.bf16.mxu0 0
        %803 = vmatpush1.bf16.msra.mxu0 %v630
        %804 = vmatprep.subr.bf16.mxu0 0
        %805 = vmatpush1.bf16.msra.mxu0 %v631
        %806 = vmatprep.subr.bf16.mxu0 0
        %807 = vmatpush1.bf16.msra.mxu0 %v632
        %808 = vmatprep.subr.bf16.mxu0 0
        %809 = vmatpush1.bf16.msra.mxu0 %v633
        %810 = vmatprep.subr.bf16.mxu0 0
        %811 = vmatpush1.bf16.msra.mxu0 %v634
        %812 = vmatprep.subr.bf16.mxu0 0
        %813 = vmatpush1.bf16.msra.mxu0 %v635
        %814 = vmatprep.subr.bf16.mxu0 0
        %815 = vmatpush1.bf16.msra.mxu0 %v636
        %816 = vmatprep.subr.bf16.mxu0 0
        %817 = vmatpush1.bf16.msra.mxu0 %v637
        %818 = vmatprep.subr.bf16.mxu0 0
        %819 = vmatpush1.bf16.msra.mxu0 %v638
        %820 = vmatprep.subr.bf16.mxu0 0
        %821 = vmatpush1.bf16.msra.mxu0 %v639
        %822 = vmatprep.subr.bf16.mxu0 0
        %823 = vmatpush1.bf16.msra.mxu0 %v640
        %824 = vmatprep.subr.bf16.mxu0 0
        %825 = vmatpush1.bf16.msra.mxu0 %v641
        %826 = vmatprep.subr.bf16.mxu0 0
        %827 = vmatpush1.bf16.msra.mxu0 %v642
        %828 = vmatprep.subr.bf16.mxu0 0
        %829 = vmatpush1.bf16.msra.mxu0 %v643
        %830 = vmatprep.subr.bf16.mxu0 0
        %831 = vmatpush1.bf16.msra.mxu0 %v644
        %832 = vmatprep.mubr.bf16.mxu0 %v380
        %833 = vmatmul.mubr.bf16.gmra.mrb[0].mxu0 %v379
        %v834 = vpop.f32.mrb[0].mxu0
        %v835 = vadd.f32 %v786, %v834
        %v836 = vpop.f32.mrb[0].mxu0
        %v837 = vpop.f32.mrb[0].mxu0
        %v838 = vadd.f32 %v789, %v837
        %v839 = vpop.f32.mrb[0].mxu0
        %840 = vmatprep.mubr.bf16.mxu0 %v387
        %841 = vmatmul.mubr.bf16.gmra.mrb[0].mxu0 %v386
        %v842 = vpop.f32.mrb[0].mxu0
        %v843 = vadd.f32 %v794, %v842
        %v844 = vpop.f32.mrb[0].mxu0
        %v845 = vpop.f32.mrb[0].mxu0
        %v846 = vadd.f32 %v797, %v845
        %v847 = vpop.f32.mrb[0].mxu0
        %848 = vdwg.mxu0
        %849 = vmatprep.subr.bf16.mxu0 0
        %850 = vmatpush1.bf16.msra.mxu0 %v645
        %851 = vmatprep.subr.bf16.mxu0 0
        %852 = vmatpush1.bf16.msra.mxu0 0
        %853 = vmatprep.subr.bf16.mxu0 0
        %854 = vmatpush1.bf16.msra.mxu0 0
        %855 = vmatprep.subr.bf16.mxu0 0
        %856 = vmatpush1.bf16.msra.mxu0 0
        %857 = vmatprep.subr.bf16.mxu0 0
        %858 = vmatpush1.bf16.msra.mxu0 0
        %859 = vmatprep.subr.bf16.mxu0 0
        %860 = vmatpush1.bf16.msra.mxu0 0
        %861 = vmatprep.subr.bf16.mxu0 0
        %862 = vmatpush1.bf16.msra.mxu0 0
        %863 = vmatprep.subr.bf16.mxu0 0
        %864 = vmatpush1.bf16.msra.mxu0 0
        %865 = vmatprep.subr.bf16.mxu0 0
        %866 = vmatpush1.bf16.msra.mxu0 0
        %867 = vmatprep.subr.bf16.mxu0 0
        %868 = vmatpush1.bf16.msra.mxu0 0
        %869 = vmatprep.subr.bf16.mxu0 0
        %870 = vmatpush1.bf16.msra.mxu0 0
        %871 = vmatprep.subr.bf16.mxu0 0
        %872 = vmatpush1.bf16.msra.mxu0 0
        %873 = vmatprep.subr.bf16.mxu0 0
        %874 = vmatpush1.bf16.msra.mxu0 0
        %875 = vmatprep.subr.bf16.mxu0 0
        %876 = vmatpush1.bf16.msra.mxu0 0
        %877 = vmatprep.subr.bf16.mxu0 0
        %878 = vmatpush1.bf16.msra.mxu0 0
        %879 = vmatprep.subr.bf16.mxu0 0
        %880 = vmatpush1.bf16.msra.mxu0 0
        %881 = vmatprep.mubr.bf16.mxu0 0
        %882 = vmatmul.mubr.bf16.gmra.mrb[0].mxu0 %v697
        %v883 = vpop.f32.mrb[0].mxu0
        %v884 = vadd.f32 %v835, %v883
        %v885 = vpop.f32.mrb[0].mxu0
        %v886 = vpop.f32.mrb[0].mxu0
        %v887 = vadd.f32 %v838, %v886
        %v888 = vpop.f32.mrb[0].mxu0
        %889 = vmatprep.mubr.bf16.mxu0 0
        %890 = vmatmul.mubr.bf16.gmra.mrb[0].mxu0 %v700
        %v891 = vpop.f32.mrb[0].mxu0
        %v892 = vadd.f32 %v843, %v891
        %v893 = vpop.f32.mrb[0].mxu0
        %v894 = vpop.f32.mrb[0].mxu0
        %v895 = vadd.f32 %v846, %v894
        %v896 = vpop.f32.mrb[0].mxu0
        %897 = vdwg.mxu0
        %898 = vst [vmem:[%s207] sm:$0xff] %v884
        %899 = vst [vmem:[%s207 + $0x8] sm:$0xff] %v887
        %900 = vst [vmem:[%s207 + $0x10] sm:$0xff] %v892
        %901 = vst [vmem:[%s207 + $0x18] sm:$0xff] %v895
        %s902 = smul.u32 4, %s18
        %p903 = scmp.lt.s32.totalorder %s902, 7
        %s904 = scalar_select %p903, %s902, 7
        %s905 = smul.addr %s904, 8
        %s906 = scalar_lea.vmem %s3, %s905
        // Predicated region
        $region41: #{mnist_logistic_forward.1} parent=31 // pred_check
          %p907 = pneg %p104
        $region42: #{mnist_logistic_forward.1} parent=31 // pred_check_branch
          %909 = sbr.rel (%p907) target = $region44
        $region43: #{mnist_logistic_forward.1} parent=31 // pred_region
          %s910 = smul.u32 4, %s18
        $region44: #{mnist_logistic_forward.1} parent=31 // pred_fallthru
          _
      $region32: #{mnist_logistic_forward.1} parent=5 // pred_fallthru
        _
      %p911 = scmp.le.s32.totalorder 2, %s13
      // Predicated region
      $region45: #{mnist_logistic_forward.1} parent=5 // pred_check
        %p912 = pneg %p911
      $region46: #{mnist_logistic_forward.1} parent=5 // pred_check_branch
        %914 = sbr.rel (%p912) target = $region48
      $region47: #{mnist_logistic_forward.1} parent=5 // pred_region
        %s915 = ssub.s32 %s13, 2
        // Predicated region
        $region49: #{mnist_logistic_forward.1} parent=47 // pred_check
          %p916 = pneg %p110
        $region50: #{mnist_logistic_forward.1} parent=47 // pred_check_branch
          %918 = sbr.rel (%p916) target = $region52
        $region51: #{mnist_logistic_forward.1} parent=47 // pred_region
          %s919 = smul.u32 4, %s19
          %p920 = scmp.lt.s32.totalorder %s919, 7
          %s921 = scalar_select %p920, %s919, 7
          %s922 = smul.addr %s921, 8
          %s923 = scalar_lea.vmem %s3, %s922
        $region52: #{mnist_logistic_forward.1} parent=47 // pred_fallthru
          _
      $region48: #{mnist_logistic_forward.1} parent=5 // pred_fallthru
        _
    $region6: #{mnist_logistic_forward.1} parent=1 // loop_footer
      %s17 = sadd.s32 1, %s13
    $region7: #{mnist_logistic_forward.1} parent=1 // loop_footer_branch
      %12 = sbr.rel target = $region3
    $region8: #{mnist_logistic_forward.1} parent=1 // loop_exit
      _
    %924 = vsyncpa [#allocation3], 1
    %s925 = scalar_lea.sflag [#allocation3], 1
    %926 = vsyncpa %s925, 1
    %927 = vsyncpa [#allocation5], 1

</llo_original>
